<compile_context>
chip_gen: v5e
topology: v5e:2x2
jax: 0.10.0
libtpu: 0.0.40
codegen_flags: <defaults>
</compile_context>

<pallas_src>
import jax
import jax.numpy as jnp
from jax.experimental import pallas as pl
from jax.experimental.pallas import tpu as pltpu

EPS = 1e-5
MOMENTUM = 0.1
_VMEM_LIMIT = 32 * 1024 * 1024
_BLOCK_CAP_BYTES = 4 * 1024 * 1024


def _pick_tiles(n, c, hw, itemsize):
    """Return (bn, hw_tile): batch-group size and lane-tile size.

    hw_tile: largest power-of-two multiple of 128 dividing hw whose (c, hw_tile)
    slab stays under the block cap (floor 128; fallback to full hw, always legal
    since block dim == array dim).  When the whole (c, hw) slab is small, group
    several batch rows per block to amortize per-grid-step overhead.
    """
    cap_elems = max(_BLOCK_CAP_BYTES // max(itemsize, 1), 128)
    hw_tile = hw
    if hw % 128 == 0:
        best = 128
        t = 256
        while t <= hw:
            if hw % t == 0 and c * t <= cap_elems:
                best = t
            t *= 2
        hw_tile = best
    bn = 1
    if hw_tile == hw:
        d = 1
        while d <= n:
            if n % d == 0 and d * c * hw_tile <= cap_elems:
                bn = d
            d *= 2
        if n * c * hw_tile <= cap_elems:
            bn = n
    return bn, hw_tile


def _stats_kernel(x_ref, sum_ref, sumsq_ref):
    """Accumulate per-(batch-block, channel) sum / sumsq across the lane-tile
    (reduction) grid axis.  Output blocks stay resident across that axis."""
    k = pl.program_id(1)
    x = x_ref[...].astype(jnp.float32)                     # (bn, C, HW_TILE)
    psum = jnp.sum(x, axis=2, keepdims=True)               # (bn, C, 1)
    psumsq = jnp.sum(x * x, axis=2, keepdims=True)

    @pl.when(k == 0)
    def _():
        sum_ref[...] = psum
        sumsq_ref[...] = psumsq

    @pl.when(k != 0)
    def _():
        sum_ref[...] += psum
        sumsq_ref[...] += psumsq


def _scale_kernel(x_ref, scale_ref, y_ref):
    # x_ref: (bn, C, HW_TILE); scale_ref: (1, C, 1) -> lane-broadcast multiply.
    y_ref[...] = (x_ref[...] * scale_ref[...]).astype(y_ref.dtype)


def bf_batch_norm(x_nchw, gammas, running_sd, training_mode):
    """x_nchw: (N, C, H, W). gammas/running_sd: (1, C, 1, 1).

    Returns (y_nchw, new_running_sd); new_running_sd == running_sd in eval mode.
    """
    N, C, H, W = x_nchw.shape
    HW = H * W

    x = x_nchw.reshape(N, C, HW)                           # free, contiguous reshape
    gamma = gammas.reshape(C, 1).astype(jnp.float32)
    rsd = running_sd.reshape(C, 1).astype(jnp.float32)

    bn, hw_tile = _pick_tiles(N, C, HW, jnp.dtype(x.dtype).itemsize)
    gn, kt = N // bn, HW // hw_tile

    x_spec = pl.BlockSpec((bn, C, hw_tile), lambda n, k: (n, 0, k))
    col_spec = pl.BlockSpec((1, C, 1), lambda n, k: (0, 0, 0))
    part_spec = pl.BlockSpec((bn, C, 1), lambda n, k: (n, 0, 0))

    if training_mode:
        psum, psumsq = pl.pallas_call(
            _stats_kernel,
            out_shape=(
                jax.ShapeDtypeStruct((N, C, 1), jnp.float32),
                jax.ShapeDtypeStruct((N, C, 1), jnp.float32),
            ),
            grid=(gn, kt),
            in_specs=[x_spec],
            out_specs=(part_spec, part_spec),
            compiler_params=pltpu.CompilerParams(
                dimension_semantics=("parallel", "arbitrary"),
                vmem_limit_bytes=_VMEM_LIMIT,
            ),
        )(x)

        # Tiny O(N*C) finalize in plain JAX (negligible next to the two passes).
        inv_m = 1.0 / float(N * HW)
        total = jnp.sum(psum, axis=0)                      # (C, 1)
        total_sq = jnp.sum(psumsq, axis=0)                 # (C, 1)
        mean = total * inv_m
        var = jnp.maximum(total_sq * inv_m - mean * mean, 0.0)
        sd = jnp.sqrt(var + EPS)                           # (C, 1)
        scale = (gamma / sd).reshape(1, C, 1)
        new_running_sd = ((1.0 - MOMENTUM) * rsd + MOMENTUM * sd).reshape(
            1, C, 1, 1).astype(running_sd.dtype)
    else:
        # Eval: fold gamma / running_sd into one per-channel scale (tiny op).
        scale = (gamma / rsd).reshape(1, C, 1)
        new_running_sd = running_sd

    y = pl.pallas_call(
        _scale_kernel,
        out_shape=jax.ShapeDtypeStruct((N, C, HW), x.dtype),
        grid=(gn, kt),
        in_specs=[x_spec, col_spec],
        out_specs=x_spec,
        compiler_params=pltpu.CompilerParams(
            dimension_semantics=("parallel", "parallel"),
            vmem_limit_bytes=_VMEM_LIMIT,
        ),
    )(x, scale)

    return y.reshape(N, C, H, W), new_running_sd


def _reference(x, gammas, running_sd, training_mode):
    # Pure-JAX reference mirroring the PyTorch forward.
    var = jnp.var(x, axis=(0, 2, 3), keepdims=True)        # unbiased=False
    sd_x = jnp.sqrt(var + EPS)
    if training_mode:
        y = x / sd_x * gammas
        new_rsd = (1 - MOMENTUM) * running_sd + MOMENTUM * sd_x
        return y, new_rsd
    return x / running_sd * gammas, running_sd


if __name__ == "__main__":
    key = jax.random.PRNGKey(0)
    kx, kg = jax.random.split(key)

    N, C, H, W = 2, 4, 16, 16
    x = jax.random.normal(kx, (N, C, H, W), dtype=jnp.float32)

    # Deterministic parameter init matching the module's __init__:
    #   gammas = clamp(randn(1,C,1,1) * (2/9/64), -0.025, 0.025)
    gammas = jnp.clip(
        jax.random.normal(kg, (1, C, 1, 1), dtype=jnp.float32) * (2.0 / 9.0 / 64.0),
        -0.025, 0.025,
    )
    running_sd = jnp.ones((1, C, 1, 1), dtype=jnp.float32)

    # Training mode
    y_tr, new_rsd = bf_batch_norm(x, gammas, running_sd, training_mode=True)
    y_tr = jax.block_until_ready(y_tr)
    new_rsd = jax.block_until_ready(new_rsd)
    y_tr_ref, new_rsd_ref = _reference(x, gammas, running_sd, True)
    assert jnp.allclose(y_tr, y_tr_ref, atol=1e-5, rtol=1e-5)
    assert jnp.allclose(new_rsd, new_rsd_ref, atol=1e-5, rtol=1e-5)

    # Eval mode (uses updated running_sd)
    y_ev, _ = bf_batch_norm(x, gammas, new_rsd, training_mode=False)
    y_ev = jax.block_until_ready(y_ev)
    y_ev_ref, _ = _reference(x, gammas, new_rsd, False)
    assert jnp.allclose(y_ev, y_ev_ref, atol=1e-5, rtol=1e-5)

    print("KERNEL_OK")
</pallas_src>

<mosaic_0001>
module attributes {stable_mosaic.version = 11 : i64} {
  func.func @_stats_kernel(%arg0: i32, %arg1: i32, %arg2: memref<2x4x256xf32, #tpu.memory_space<vmem>>, %arg3: memref<2x4x1xf32, #tpu.memory_space<vmem>>, %arg4: memref<2x4x1xf32, #tpu.memory_space<vmem>>) attributes {dimension_semantics = [#tpu.dimension_semantics<parallel>, #tpu.dimension_semantics<arbitrary>], iteration_bounds = array<i64: 1, 1>, scalar_prefetch = 0 : i64, scratch_operands = 0 : i64, tpu.core_type = #tpu.core_type<tc>, window_params = [{transform_indices = @transform_0, window_bounds = array<i64: 2, 4, 256>}, {transform_indices = @transform_1, window_bounds = array<i64: 2, 4, 1>}, {transform_indices = @transform_2, window_bounds = array<i64: 2, 4, 1>}]} {
    %c0 = arith.constant 0 : index
    %c0_0 = arith.constant 0 : index
    %c0_1 = arith.constant 0 : index
    %0 = vector.load %arg2[%c0, %c0_0, %c0_1] : memref<2x4x256xf32, #tpu.memory_space<vmem>>, vector<2x4x256xf32>
    %cst = arith.constant dense<0.000000e+00> : vector<2x4xf32>
    %1 = vector.multi_reduction <add>, %0, %cst [2] : vector<2x4x256xf32> to vector<2x4xf32>
    %2 = vector.shape_cast %1 : vector<2x4xf32> to vector<2x4x1xf32>
    %3 = arith.mulf %0, %0 : vector<2x4x256xf32>
    %cst_2 = arith.constant dense<0.000000e+00> : vector<2x4xf32>
    %4 = vector.multi_reduction <add>, %3, %cst_2 [2] : vector<2x4x256xf32> to vector<2x4xf32>
    %5 = vector.shape_cast %4 : vector<2x4xf32> to vector<2x4x1xf32>
    %c0_i32 = arith.constant 0 : i32
    %6 = arith.cmpi eq, %arg1, %c0_i32 : i32
    %7 = arith.extui %6 : i1 to i32
    %c0_i32_3 = arith.constant 0 : i32
    %8 = arith.cmpi ne, %7, %c0_i32_3 : i32
    scf.if %8 {
      %c0_6 = arith.constant 0 : index
      %c0_7 = arith.constant 0 : index
      %c0_8 = arith.constant 0 : index
      %12 = vector.load %arg3[%c0_6, %c0_7, %c0_8] : memref<2x4x1xf32, #tpu.memory_space<vmem>>, vector<2x4x1xf32>
      tpu.vector_store %arg3[%c0_6, %c0_7, %c0_8], %2 {strides = array<i32>} : memref<2x4x1xf32, #tpu.memory_space<vmem>>, vector<2x4x1xf32>,
      %c0_9 = arith.constant 0 : index
      %c0_10 = arith.constant 0 : index
      %c0_11 = arith.constant 0 : index
      %13 = vector.load %arg4[%c0_9, %c0_10, %c0_11] : memref<2x4x1xf32, #tpu.memory_space<vmem>>, vector<2x4x1xf32>
      tpu.vector_store %arg4[%c0_9, %c0_10, %c0_11], %5 {strides = array<i32>} : memref<2x4x1xf32, #tpu.memory_space<vmem>>, vector<2x4x1xf32>,
    } else {
    }
    %c0_i32_4 = arith.constant 0 : i32
    %9 = arith.cmpi ne, %arg1, %c0_i32_4 : i32
    %10 = arith.extui %9 : i1 to i32
    %c0_i32_5 = arith.constant 0 : i32
    %11 = arith.cmpi ne, %10, %c0_i32_5 : i32
    scf.if %11 {
      %c0_6 = arith.constant 0 : index
      %c0_7 = arith.constant 0 : index
      %c0_8 = arith.constant 0 : index
      %12 = vector.load %arg3[%c0_6, %c0_7, %c0_8] : memref<2x4x1xf32, #tpu.memory_space<vmem>>, vector<2x4x1xf32>
      %13 = arith.addf %12, %2 : vector<2x4x1xf32>
      %c0_9 = arith.constant 0 : index
      %c0_10 = arith.constant 0 : index
      %c0_11 = arith.constant 0 : index
      %14 = vector.load %arg3[%c0_9, %c0_10, %c0_11] : memref<2x4x1xf32, #tpu.memory_space<vmem>>, vector<2x4x1xf32>
      tpu.vector_store %arg3[%c0_9, %c0_10, %c0_11], %13 {strides = array<i32>} : memref<2x4x1xf32, #tpu.memory_space<vmem>>, vector<2x4x1xf32>,
      %c0_12 = arith.constant 0 : index
      %c0_13 = arith.constant 0 : index
      %c0_14 = arith.constant 0 : index
      %15 = vector.load %arg4[%c0_12, %c0_13, %c0_14] : memref<2x4x1xf32, #tpu.memory_space<vmem>>, vector<2x4x1xf32>
      %16 = arith.addf %15, %5 : vector<2x4x1xf32>
      %c0_15 = arith.constant 0 : index
      %c0_16 = arith.constant 0 : index
      %c0_17 = arith.constant 0 : index
      %17 = vector.load %arg4[%c0_15, %c0_16, %c0_17] : memref<2x4x1xf32, #tpu.memory_space<vmem>>, vector<2x4x1xf32>
      tpu.vector_store %arg4[%c0_15, %c0_16, %c0_17], %16 {strides = array<i32>} : memref<2x4x1xf32, #tpu.memory_space<vmem>>, vector<2x4x1xf32>,
    } else {
    }
    return
  }
  func.func @transform_0(%arg0: i32, %arg1: i32) -> (i32, i32, i32) {
    %c0_i32 = arith.constant 0 : i32
    %c0_i32_0 = arith.constant 0 : i32
    return %arg0, %c0_i32, %arg1 : i32, i32, i32
  }
  func.func @transform_1(%arg0: i32, %arg1: i32) -> (i32, i32, i32) {
    %c0_i32 = arith.constant 0 : i32
    %c0_i32_0 = arith.constant 0 : i32
    %c0_i32_1 = arith.constant 0 : i32
    return %arg0, %c0_i32, %c0_i32_0 : i32, i32, i32
  }
  func.func @transform_2(%arg0: i32, %arg1: i32) -> (i32, i32, i32) {
    %c0_i32 = arith.constant 0 : i32
    %c0_i32_0 = arith.constant 0 : i32
    %c0_i32_1 = arith.constant 0 : i32
    return %arg0, %c0_i32, %c0_i32_0 : i32, i32, i32
  }
}

</mosaic_0001>

<llo_original>
// kernel: tpu_custom_call.1
$region0: #{tpu_custom_call.1}
  #allocation0 [shape = 'u32[]', space=smem, size = 0x4, offset = 0x4, fixed_abs, tag = 'smem constant byte address 0x4 - core index']
  #allocation1 [shape = 'u32[72,128]{1,0:T(1,128)}', space=vmem, size = 0x9000, scoped, tag = 'internal scratch']
  %s0 = inlined_call_operand.hbm [shape: f32[2,4,256], index: 0, kind: input, shape index: {}]
  %s1 = inlined_call_operand.vmem [shape: f32[2,4,1], index: 1, kind: output, shape index: {0}]
  %s2 = inlined_call_operand.vmem [shape: f32[2,4,1], index: 2, kind: output, shape index: {1}]
  %3 = xla_tuple %s1, %s2
  %s4 = sld [smem:[#allocation0]]
  $region34: #{tpu_custom_call.1} parent=0
    _
  %s6 = ssub.s32 1, %s4
  %s7 = scalar_select 0, %s6, %s4
  $region1: #{tpu_custom_call.1} parent=0
    #allocation2 [shape = 'u8[8192]{0}', space=vmem, size = 0x2000, scoped, tag = 'input window, operand 0, single buffered']
    #allocation3 [shape = 's32[1]{0}', space=sflag, size = 0x4, scoped, tag = 'scoped memory for tpu_custom_call.1']
    %8 = vsyncpa [#allocation3], 0
    // Predicated region
    $region2: #{tpu_custom_call.1} parent=1 // pred_check
      _
    $region3: #{tpu_custom_call.1} parent=1 // pred_check_branch
      %10 = sbr.rel (0) target = $region5
    $region4: #{tpu_custom_call.1} parent=1 // pred_region
      %12 = vsyncadd [#allocation3], 0
      %s13 = sshll.u32 %s0, 4
      %s14 = int_to_ptr.hbm [resolvable:$true] %s13
      %s15 = sshll.u32 [#allocation2], 4
      %s16 = int_to_ptr.vmem [resolvable:$true] %s15
      %21 = dma.hbm_to_vmem [thread:$0]  %s14, 256, %s16, [#allocation3], 128, 128, 8
    $region5: #{tpu_custom_call.1} parent=1 // pred_fallthru
      _
    // Predicated region
    $region6: #{tpu_custom_call.1} parent=1 // pred_check
      _
    $region7: #{tpu_custom_call.1} parent=1 // pred_check_branch
      %23 = sbr.rel (0) target = $region9
    $region8: #{tpu_custom_call.1} parent=1 // pred_region
      %25 = dma.done [#allocation3], 256
    $region9: #{tpu_custom_call.1} parent=1 // pred_fallthru
      _
    %v26 = vld [vmem:[#allocation2] sm:$0xff]
    %v27 = vld [vmem:[#allocation2 + $0x8] sm:$0xff]
    %30 = vst [vmem:[#allocation1] ss:$2 sm:$0xff] %v26
    %v31 = vld.sshfl [vmem:[#allocation1] sm:$0xff pattern:$0x75316420]
    %v32 = vld.sshfl [vmem:[#allocation1 + $0x8] sm:$0xff pattern:$0x75316420]
    %s33 = scalar_lea.vmem [#allocation1], 16
    %34 = vst [vmem:[%s33] ss:$2 sm:$0xff] %v27
    %v35 = vld.sshfl [vmem:[#allocation1 + $0x10] sm:$0xff pattern:$0x75316420]
    %v36 = vld.sshfl [vmem:[#allocation1 + $0x18] sm:$0xff pattern:$0x75316420]
    %vm41 = vcmask 1043456
    %v42 = vsel %vm41, %v31, 0.0
    %v43 = vsel %vm41, %v32, 0.0
    %v44 = vadd.f32 %v42, %v43
    %45 = vadd.xlane.f32.xlu0 %v44
    %v46 = vpop.xlane.xlu0 %45
    %v47 = vsel %vm41, %v35, 0.0
    %v48 = vsel %vm41, %v36, 0.0
    %v49 = vadd.f32 %v47, %v48
    %50 = vadd.xlane.f32.xlu0 %v49
    %v51 = vpop.xlane.xlu0 %50
    %v52 = vmul.f32 %v26, %v26
    %v53 = vmul.f32 %v27, %v27
    %56 = vst [vmem:[#allocation1] ss:$2 sm:$0xff] %v52
    %v57 = vld.sshfl [vmem:[#allocation1] sm:$0xff pattern:$0x75316420]
    %v58 = vld.sshfl [vmem:[#allocation1 + $0x8] sm:$0xff pattern:$0x75316420]
    %s59 = scalar_lea.vmem [#allocation1], 16
    %60 = vst [vmem:[%s59] ss:$2 sm:$0xff] %v53
    %v61 = vld.sshfl [vmem:[#allocation1 + $0x10] sm:$0xff pattern:$0x75316420]
    %v62 = vld.sshfl [vmem:[#allocation1 + $0x18] sm:$0xff pattern:$0x75316420]
    %v67 = vsel %vm41, %v57, 0.0
    %v68 = vsel %vm41, %v58, 0.0
    %v69 = vadd.f32 %v67, %v68
    %70 = vadd.xlane.f32.xlu0 %v69
    %v71 = vpop.xlane.xlu0 %70
    %v72 = vsel %vm41, %v61, 0.0
    %v73 = vsel %vm41, %v62, 0.0
    %v74 = vadd.f32 %v72, %v73
    %75 = vadd.xlane.f32.xlu0 %v74
    %v76 = vpop.xlane.xlu0 %75
    %p77 = scmp.eq.s32.totalorder 0, 0
    // Predicated region
    $region10: #{tpu_custom_call.1} parent=1 // pred_check
      %p78 = pneg %p77
    $region11: #{tpu_custom_call.1} parent=1 // pred_check_branch
      %80 = sbr.rel (%p78) target = $region13
    $region12: #{tpu_custom_call.1} parent=1 // pred_region
      %vm81 = vcmask 3072
      %82 = vst.msk [vmem:[%s1] sm:$0xf] %vm81, %v46
      %83 = vst.msk [vmem:[%s1 + $0x4] sm:$0xf] %vm81, %v51
      %84 = vst.msk [vmem:[%s2] sm:$0xf] %vm81, %v71
      %85 = vst.msk [vmem:[%s2 + $0x4] sm:$0xf] %vm81, %v76
    $region13: #{tpu_custom_call.1} parent=1 // pred_fallthru
      _
    %p86 = scmp.ne.s32.totalorder 0, 0
    // Predicated region
    $region14: #{tpu_custom_call.1} parent=1 // pred_check
      %p87 = pneg %p86
    $region15: #{tpu_custom_call.1} parent=1 // pred_check_branch
      %89 = sbr.rel (%p87) target = $region17
    $region16: #{tpu_custom_call.1} parent=1 // pred_region
      %v90 = vld [vmem:[%s1] sm:$0xf]
      %v91 = vld [vmem:[%s1 + $0x4] sm:$0xf]
      %v92 = vadd.f32 %v90, %v46
      %v93 = vadd.f32 %v91, %v51
      %vm94 = vcmask 3072
      %95 = vst.msk [vmem:[%s1] sm:$0xf] %vm94, %v92
      %96 = vst.msk [vmem:[%s1 + $0x4] sm:$0xf] %vm94, %v93
      %v97 = vld [vmem:[%s2] sm:$0xf]
      %v98 = vld [vmem:[%s2 + $0x4] sm:$0xf]
      %v99 = vadd.f32 %v97, %v71
      %v100 = vadd.f32 %v98, %v76
      %101 = vst.msk [vmem:[%s2] sm:$0xf] %vm94, %v99
      %102 = vst.msk [vmem:[%s2 + $0x4] sm:$0xf] %vm94, %v100
    $region17: #{tpu_custom_call.1} parent=1 // pred_fallthru
      _
    // Predicated region
    $region18: #{tpu_custom_call.1} parent=1 // pred_check
      _
    $region19: #{tpu_custom_call.1} parent=1 // pred_check_branch
      %104 = sbr.rel (0) target = $region21
    $region20: #{tpu_custom_call.1} parent=1 // pred_region
      _
    $region21: #{tpu_custom_call.1} parent=1 // pred_fallthru
      _
    // Predicated region
    $region22: #{tpu_custom_call.1} parent=1 // pred_check
      _
    $region23: #{tpu_custom_call.1} parent=1 // pred_check_branch
      %106 = sbr.rel (0) target = $region25
    $region24: #{tpu_custom_call.1} parent=1 // pred_region
      _
    $region25: #{tpu_custom_call.1} parent=1 // pred_fallthru
      _
    // Predicated region
    $region26: #{tpu_custom_call.1} parent=1 // pred_check
      _
    $region27: #{tpu_custom_call.1} parent=1 // pred_check_branch
      %108 = sbr.rel (0) target = $region29
    $region28: #{tpu_custom_call.1} parent=1 // pred_region
      _
    $region29: #{tpu_custom_call.1} parent=1 // pred_fallthru
      _
    // Predicated region
    $region30: #{tpu_custom_call.1} parent=1 // pred_check
      _
    $region31: #{tpu_custom_call.1} parent=1 // pred_check_branch
      %110 = sbr.rel (0) target = $region33
    $region32: #{tpu_custom_call.1} parent=1 // pred_region
      _
    $region33: #{tpu_custom_call.1} parent=1 // pred_fallthru
      _
    %111 = vsyncpa [#allocation3], 1

</llo_original>
